<compile_context>
chip_gen: v5e
topology: v5e:2x2
jax: 0.10.0
libtpu: 0.0.40
codegen_flags: <defaults>
</compile_context>

<pallas_src>
import jax
import jax.numpy as jnp
from jax.experimental import pallas as pl
from jax.experimental.pallas import tpu as pltpu

_R = 16    # augmented / sublane-padded hidden width (10 outputs + ones row + pad)
_ONE = 10  # index of the constant-one row


def _cdiv(a, b):
    return -(-a // b)


def _chip_config():
    """Per-generation compute dtype, max batch-lane tile and VMEM limit."""
    try:
        kind = jax.devices()[0].device_kind.lower()
    except Exception:
        kind = ""
    if "v7" in kind:
        # 2 TCs share HBM, 64 MiB physical VMEM/TC, bf16 VALU.
        return dict(compute=jnp.bfloat16, max_tile=65536,
                    vmem_limit=48 << 20, min_steps_large=2)
    if "v6" in kind or "trillium" in kind:
        # 128 MiB VMEM, bf16 VALU; big tiles amortize ~0.35us/grid-step overhead.
        return dict(compute=jnp.bfloat16, max_tile=131072,
                    vmem_limit=100 << 20, min_steps_large=1)
    if "v5e" in kind or "v5 lite" in kind or "v5lite" in kind:
        # No bf16 VPU: keep elementwise in f32; MXU operands are still bf16.
        return dict(compute=jnp.float32, max_tile=32768,
                    vmem_limit=64 << 20, min_steps_large=1)
    # Unknown chip: conservative tile that fits a 16 MiB scoped-VMEM default.
    return dict(compute=jnp.float32, max_tile=8192,
                vmem_limit=None, min_steps_large=1)


def _mlp_kernel(x_ref, w2a_ref, w3a_ref, p1_ref, o_ref):
    # x_ref  : (1, TB)   io dtype (f32), batch on the lane axis
    # w2a_ref: (16, 16)  mxu dtype: [[W2 | b2]; e10] augmented layer-2 weights
    # w3a_ref: (8, 16)   mxu dtype: row 0 = [w3 | b3], rows 1..7 zero
    # p1_ref : (16, 2)   compute dtype: col 0 = w1_aug, col 1 = b1_aug (b1_aug[10]=1)
    # o_ref  : (1, TB)   io dtype (f32)
    cdt = p1_ref.dtype        # elementwise compute dtype (bf16 on v6e/v7x)
    mdt = w2a_ref.dtype       # MXU operand dtype (bf16 everywhere by default)

    x = x_ref[...].astype(cdt)                                  # (1, TB)
    w1 = p1_ref[:, 0:1]                                         # (16, 1)
    b1 = p1_ref[:, 1:2]                                         # (16, 1)

    # Layer 1: Linear(1,10) + ReLU as a VPU broadcast FMA; row 10 becomes the
    # constant-one row (0*x + 1) that folds b2/b3 into the matmuls below.
    h1 = jnp.maximum(w1 * x + b1, 0.0).astype(mdt)              # (16, TB)

    # Layer 2: Linear(10,10) with b2 folded in; the only sizeable matmul.
    h2 = jnp.dot(w2a_ref[...], h1, preferred_element_type=jnp.float32)
    h2 = jnp.maximum(h2.astype(mdt), 0.0)                       # (16, TB)

    # Layer 3: Linear(10,1) with b3 folded in; MXU dot instead of VPU mul +
    # XLU sublane reduce.  Row 0 of the (8, TB) result is the output.
    y = jnp.dot(w3a_ref[...], h2, preferred_element_type=jnp.float32)
    o_ref[...] = y[0:1, :].astype(o_ref.dtype)


def pruned_network_forward(x, params, *, tile_b=None,
                           compute_dtype=None, mxu_dtype=None):
    """x: (B, 1) float32. params: PyTorch-convention Linear weights/biases."""
    B = x.shape[0]
    cfg = _chip_config()
    if compute_dtype is None:
        compute_dtype = cfg["compute"]
    if mxu_dtype is None:
        mxu_dtype = jnp.bfloat16

    # ---- batch-lane tiling ---------------------------------------------
    if tile_b is not None:
        assert tile_b % 128 == 0, "batch tile must be a multiple of 128 lanes"
        nb = max(_cdiv(B, tile_b), 1)
    else:
        min_steps = cfg["min_steps_large"] if B >= 2048 else 1
        ncol = _cdiv(max(B, 1), 128)                  # 128-lane columns of work
        max_cols = max(cfg["max_tile"] // 128, 1)
        nb = min(max(_cdiv(ncol, max_cols), min_steps), ncol)
        tile_cols = _cdiv(ncol, nb)
        nb = _cdiv(ncol, tile_cols)                   # drop empty trailing steps
        tile_b = tile_cols * 128
    B_pad = nb * tile_b

    # ---- repack params (PyTorch: weight is (out, in)) --------------------
    f32 = jnp.float32
    w1 = params["w1"].astype(f32).reshape(10)
    b1 = params["b1"].astype(f32).reshape(10)
    w2 = params["w2"].astype(f32)                     # (10, 10), h2 = W2 @ h1
    b2 = params["b2"].astype(f32).reshape(10)
    w3 = params["w3"].astype(f32).reshape(10)
    b3 = params["b3"].astype(f32).reshape(())

    w1a = jnp.zeros((_R,), f32).at[:10].set(w1)
    b1a = jnp.zeros((_R,), f32).at[:10].set(b1).at[_ONE].set(1.0)
    p1 = jnp.stack([w1a, b1a], axis=1).astype(compute_dtype)         # (16, 2)

    w2a = jnp.zeros((_R, _R), f32)
    w2a = w2a.at[:10, :10].set(w2).at[:10, _ONE].set(b2).at[_ONE, _ONE].set(1.0)
    w2a = w2a.astype(mxu_dtype)                                       # (16, 16)

    w3a = jnp.zeros((8, _R), f32)
    w3a = w3a.at[0, :10].set(w3).at[0, _ONE].set(b3)
    w3a = w3a.astype(mxu_dtype)                                       # (8, 16)

    # ---- lane-dense input: batch on the 128-lane axis --------------------
    xr = x.astype(f32).reshape(B)
    if B_pad != B:
        xr = jnp.pad(xr, (0, B_pad - B))
    x2 = xr.reshape(1, B_pad)

    out = pl.pallas_call(
        _mlp_kernel,
        out_shape=jax.ShapeDtypeStruct((1, B_pad), f32),
        grid=(nb,),
        in_specs=[
            pl.BlockSpec((1, tile_b), lambda i: (0, i)),   # x tile, lane-dense
            pl.BlockSpec((_R, _R), lambda i: (0, 0)),      # W2_aug: VMEM-resident
            pl.BlockSpec((8, _R), lambda i: (0, 0)),       # w3_aug: VMEM-resident
            pl.BlockSpec((_R, 2), lambda i: (0, 0)),       # [w1_aug | b1_aug]
        ],
        out_specs=pl.BlockSpec((1, tile_b), lambda i: (0, i)),
        compiler_params=pltpu.CompilerParams(
            dimension_semantics=("parallel",),             # megacore on v7x
            vmem_limit_bytes=cfg["vmem_limit"]),
    )(x2, w2a, w3a, p1)

    # TODO(synk): x/o could be laid out (8, B_pad/8) to remove the 8x sublane
    # padding of the (1, tile_b) VMEM blocks, and a bf16 x/o HBM path would
    # halve I/O bytes; both skipped since the kernel remains VALU-bound.
    return out.reshape(B_pad)[:B].reshape(B, 1)


def _reference_forward(x, params):
    h1 = jnp.maximum(x @ params["w1"].T + params["b1"], 0.0)
    h2 = jnp.maximum(h1 @ params["w2"].T + params["b2"], 0.0)
    return h2 @ params["w3"].T + params["b3"]


def init_params(key):
    """Deterministic init mirroring module.weight/bias ~ Normal(0, 1)."""
    ks = jax.random.split(key, 6)
    return {
        "w1": jax.random.normal(ks[0], (10, 1), jnp.float32),   # (out, in)
        "b1": jax.random.normal(ks[1], (10,), jnp.float32),
        "w2": jax.random.normal(ks[2], (10, 10), jnp.float32),
        "b2": jax.random.normal(ks[3], (10,), jnp.float32),
        "w3": jax.random.normal(ks[4], (1, 10), jnp.float32),
        "b3": jax.random.normal(ks[5], (1,), jnp.float32),
    }


if __name__ == "__main__":
    key = jax.random.PRNGKey(0)
    pkey, xkey, xkey2 = jax.random.split(key, 3)
    params = init_params(pkey)

    # 1) Full-precision path (f32 compute + f32 MXU emulation): structural
    #    correctness of the augmented/bias-folded kernel at tight tolerance.
    x_small = jax.random.normal(xkey, (8, 1), jnp.float32)
    ref_small = _reference_forward(x_small, params)
    out_exact = jax.block_until_ready(
        pruned_network_forward(x_small, params,
                               compute_dtype=jnp.float32,
                               mxu_dtype=jnp.float32))
    assert out_exact.shape == (8, 1)
    assert jnp.allclose(out_exact, ref_small, atol=1e-3, rtol=1e-3), \
        "exact-path mismatch"

    # 2) Default fast path (bf16 elementwise on v6e/v7x, bf16 MXU operands
    #    everywhere): mixed-precision tolerance.
    out_fast = jax.block_until_ready(pruned_network_forward(x_small, params))
    assert out_fast.shape == (8, 1)
    assert jnp.allclose(out_fast, ref_small, atol=5e-1, rtol=5e-2), \
        "fast-path mismatch"

    # 3) Tiled parallel batch grid + padded tail (300 -> 3 steps of 128 lanes).
    x_big = jax.random.normal(xkey2, (300, 1), jnp.float32)
    ref_big = _reference_forward(x_big, params)
    out_big = jax.block_until_ready(
        pruned_network_forward(x_big, params, tile_b=128))
    assert out_big.shape == (300, 1)
    assert jnp.allclose(out_big, ref_big, atol=5e-1, rtol=5e-2), \
        "tiled-batch mismatch"

    print("KERNEL_OK")
</pallas_src>

<mosaic_0001>
module attributes {stable_mosaic.version = 11 : i64} {
  func.func @_mlp_kernel(%arg0: i32, %arg1: memref<1x128xf32, #tpu.memory_space<vmem>>, %arg2: memref<16x16xf32, #tpu.memory_space<vmem>>, %arg3: memref<8x16xf32, #tpu.memory_space<vmem>>, %arg4: memref<16x2xf32, #tpu.memory_space<vmem>>, %arg5: memref<1x128xf32, #tpu.memory_space<vmem>>) attributes {dimension_semantics = [#tpu.dimension_semantics<parallel>], iteration_bounds = array<i64: 1>, scalar_prefetch = 0 : i64, scratch_operands = 0 : i64, tpu.core_type = #tpu.core_type<tc>, window_params = [{transform_indices = @transform_0, window_bounds = array<i64: 1, 128>}, {pipeline_mode = #tpu.pipeline_mode<synchronous>, transform_indices = @transform_1, window_bounds = array<i64: 16, 16>}, {pipeline_mode = #tpu.pipeline_mode<synchronous>, transform_indices = @transform_2, window_bounds = array<i64: 8, 16>}, {pipeline_mode = #tpu.pipeline_mode<synchronous>, transform_indices = @transform_3, window_bounds = array<i64: 16, 2>}, {transform_indices = @transform_4, window_bounds = array<i64: 1, 128>}]} {
    %c0 = arith.constant 0 : index
    %c0_0 = arith.constant 0 : index
    %0 = vector.load %arg1[%c0, %c0_0] : memref<1x128xf32, #tpu.memory_space<vmem>>, vector<1x128xf32>
    %c0_1 = arith.constant 0 : index
    %c0_2 = arith.constant 0 : index
    %1 = vector.load %arg4[%c0_1, %c0_2] : memref<16x2xf32, #tpu.memory_space<vmem>>, vector<16x1xf32>
    %c0_3 = arith.constant 0 : index
    %c1 = arith.constant 1 : index
    %2 = vector.load %arg4[%c0_3, %c1] : memref<16x2xf32, #tpu.memory_space<vmem>>, vector<16x1xf32>
    %3 = vector.broadcast %1 : vector<16x1xf32> to vector<16x128xf32>
    %4 = vector.broadcast %0 : vector<1x128xf32> to vector<16x128xf32>
    %5 = arith.mulf %3, %4 : vector<16x128xf32>
    %6 = vector.broadcast %2 : vector<16x1xf32> to vector<16x128xf32>
    %7 = arith.addf %5, %6 : vector<16x128xf32>
    %cst = arith.constant 0.000000e+00 : f32
    %8 = vector.broadcast %cst : f32 to vector<16x128xf32>
    %9 = arith.maximumf %7, %8 : vector<16x128xf32>
    %c0_4 = arith.constant 0 : index
    %c0_5 = arith.constant 0 : index
    %10 = vector.load %arg2[%c0_4, %c0_5] : memref<16x16xf32, #tpu.memory_space<vmem>>, vector<16x16xf32>
    %cst_6 = arith.constant dense<0.000000e+00> : vector<16x128xf32>
    %11 = tpu.matmul %10, %9, %cst_6 {dimension_numbers = #tpu.dot_dimension_numbers<[1], [0], [0], [1], [0, 0, 1, 1], [], []>} : vector<16x16xf32>, vector<16x128xf32>, vector<16x128xf32> -> vector<16x128xf32>
    %cst_7 = arith.constant 0.000000e+00 : f32
    %12 = vector.broadcast %cst_7 : f32 to vector<16x128xf32>
    %13 = arith.maximumf %11, %12 : vector<16x128xf32>
    %c0_8 = arith.constant 0 : index
    %c0_9 = arith.constant 0 : index
    %14 = vector.load %arg3[%c0_8, %c0_9] : memref<8x16xf32, #tpu.memory_space<vmem>>, vector<8x16xf32>
    %cst_10 = arith.constant dense<0.000000e+00> : vector<8x128xf32>
    %15 = tpu.matmul %14, %13, %cst_10 {dimension_numbers = #tpu.dot_dimension_numbers<[1], [0], [0], [1], [0, 0, 1, 1], [], []>} : vector<8x16xf32>, vector<16x128xf32>, vector<8x128xf32> -> vector<8x128xf32>
    %16 = vector.extract_strided_slice %15 {offsets = [0, 0], sizes = [1, 128], strides = [1, 1]} : vector<8x128xf32> to vector<1x128xf32>
    %c0_11 = arith.constant 0 : index
    %c0_12 = arith.constant 0 : index
    %17 = vector.load %arg5[%c0_11, %c0_12] : memref<1x128xf32, #tpu.memory_space<vmem>>, vector<1x128xf32>
    tpu.vector_store %arg5[%c0_11, %c0_12], %16 {strides = array<i32>} : memref<1x128xf32, #tpu.memory_space<vmem>>, vector<1x128xf32>,
    return
  }
  func.func @transform_0(%arg0: i32) -> (i32, i32) {
    %c0_i32 = arith.constant 0 : i32
    %c0_i32_0 = arith.constant 0 : i32
    return %c0_i32, %arg0 : i32, i32
  }
  func.func @transform_1(%arg0: i32) -> (i32, i32) {
    %c0_i32 = arith.constant 0 : i32
    %c0_i32_0 = arith.constant 0 : i32
    %c0_i32_1 = arith.constant 0 : i32
    return %c0_i32, %c0_i32_0 : i32, i32
  }
  func.func @transform_2(%arg0: i32) -> (i32, i32) {
    %c0_i32 = arith.constant 0 : i32
    %c0_i32_0 = arith.constant 0 : i32
    %c0_i32_1 = arith.constant 0 : i32
    return %c0_i32, %c0_i32_0 : i32, i32
  }
  func.func @transform_3(%arg0: i32) -> (i32, i32) {
    %c0_i32 = arith.constant 0 : i32
    %c0_i32_0 = arith.constant 0 : i32
    %c0_i32_1 = arith.constant 0 : i32
    return %c0_i32, %c0_i32_0 : i32, i32
  }
  func.func @transform_4(%arg0: i32) -> (i32, i32) {
    %c0_i32 = arith.constant 0 : i32
    %c0_i32_0 = arith.constant 0 : i32
    return %c0_i32, %arg0 : i32, i32
  }
}

</mosaic_0001>

<llo_original>
// kernel: tpu_custom_call.1
$region0: #{tpu_custom_call.1}
  #allocation0 [shape = 'u32[]', space=smem, size = 0x4, offset = 0x4, fixed_abs, tag = 'smem constant byte address 0x4 - core index']
  #allocation1 [shape = 'u32[72,128]{1,0:T(1,128)}', space=vmem, size = 0x9000, scoped, tag = 'internal scratch']
  %s0 = inlined_call_operand.vmem [shape: f32[1,128], index: 0, kind: input, shape index: {}]
  %s1 = inlined_call_operand.vmem [shape: f32[16,16], index: 1, kind: input, shape index: {}]
  %s2 = inlined_call_operand.hbm [shape: f32[8,16], index: 2, kind: input, shape index: {}]
  %s3 = inlined_call_operand.vmem [shape: f32[16,2], index: 3, kind: input, shape index: {}]
  %s4 = inlined_call_operand.hbm [shape: f32[1,128], index: 4, kind: output, shape index: {}]
  %s5 = sld [smem:[#allocation0]]
  $region30: #{tpu_custom_call.1} parent=0
    _
  %s7 = ssub.s32 1, %s5
  %s8 = scalar_select 0, %s7, %s5
  $region1: #{tpu_custom_call.1} parent=0
    #allocation2 [shape = 'u8[4096]{0}', space=vmem, size = 0x1000, scoped, tag = 'input window, operand 2, single buffered']
    #allocation3 [shape = 's32[1]{0}', space=sflag, size = 0x4, scoped, tag = 'scoped memory for tpu_custom_call.1']
    #allocation4 [shape = 's32[1]{0}', space=sflag, size = 0x4, scoped, tag = 'scoped memory for tpu_custom_call.1']
    #allocation5 [shape = 'u8[512]{0}', space=vmem, size = 0x400, scoped, tag = 'output window, operand 0, single buffered']
    %9 = vsyncpa [#allocation3], 0
    %10 = vsyncpa [#allocation4], 0
    // Predicated region
    $region2: #{tpu_custom_call.1} parent=1 // pred_check
      _
    $region3: #{tpu_custom_call.1} parent=1 // pred_check_branch
      %12 = sbr.rel (0) target = $region5
    $region4: #{tpu_custom_call.1} parent=1 // pred_region
      _
    $region5: #{tpu_custom_call.1} parent=1 // pred_fallthru
      _
    // Predicated region
    $region6: #{tpu_custom_call.1} parent=1 // pred_check
      _
    $region7: #{tpu_custom_call.1} parent=1 // pred_check_branch
      %14 = sbr.rel (0) target = $region9
    $region8: #{tpu_custom_call.1} parent=1 // pred_region
      _
    $region9: #{tpu_custom_call.1} parent=1 // pred_fallthru
      _
    // Predicated region
    $region10: #{tpu_custom_call.1} parent=1 // pred_check
      _
    $region11: #{tpu_custom_call.1} parent=1 // pred_check_branch
      %16 = sbr.rel (0) target = $region13
    $region12: #{tpu_custom_call.1} parent=1 // pred_region
      %18 = vsyncadd [#allocation3], 0
      %s20 = sshll.u32 %s2, 4
      %s21 = int_to_ptr.hbm [resolvable:$true] %s20
      %s22 = sshll.u32 [#allocation2], 4
      %s23 = int_to_ptr.vmem [resolvable:$true] %s22
      %25 = dma.hbm_to_vmem [thread:$0]  %s21, 128, %s23, [#allocation3]
    $region13: #{tpu_custom_call.1} parent=1 // pred_fallthru
      _
    // Predicated region
    $region14: #{tpu_custom_call.1} parent=1 // pred_check
      _
    $region15: #{tpu_custom_call.1} parent=1 // pred_check_branch
      %27 = sbr.rel (0) target = $region17
    $region16: #{tpu_custom_call.1} parent=1 // pred_region
      _
    $region17: #{tpu_custom_call.1} parent=1 // pred_fallthru
      _
    // Predicated region
    $region18: #{tpu_custom_call.1} parent=1 // pred_check
      _
    $region19: #{tpu_custom_call.1} parent=1 // pred_check_branch
      %29 = sbr.rel (0) target = $region21
    $region20: #{tpu_custom_call.1} parent=1 // pred_region
      %31 = dma.done [#allocation3], 128
    $region21: #{tpu_custom_call.1} parent=1 // pred_fallthru
      _
    %v32 = vld [vmem:[%s0] sm:$0x1]
    %v33 = vld [vmem:[%s3] sm:$0xff]
    %v34 = vld [vmem:[%s3 + $0x8] sm:$0xff]
    %36 = vset.pattern.permute.xlu0 0
    %37 = vperm.xlu0 %36, %v33
    %v38 = vpop.permute.xlu0 %37
    %41 = vset.pattern.permute.xlu0 0
    %42 = vperm.xlu0 %41, %v34
    %v43 = vpop.permute.xlu0 %42
    %v46 = vperm.slane %v32, 0
    %v48 = vmul.f32 %v38, %v46
    %v49 = vmul.f32 %v43, %v46
    %50 = vset.pattern.permute.xlu0 1
    %51 = vperm.xlu0 %50, %v33
    %v52 = vpop.permute.xlu0 %51
    %54 = vset.pattern.permute.xlu0 1
    %55 = vperm.xlu0 %54, %v34
    %v56 = vpop.permute.xlu0 %55
    %v58 = vadd.f32 %v48, %v52
    %v59 = vadd.f32 %v49, %v56
    %v60 = vmax.f32 %v58, 0.0
    %v61 = vmax.f32 %v59, 0.0
    %v62 = vld [vmem:[%s1] sm:$0xff]
    %v63 = vld [vmem:[%s1 + $0x8] sm:$0xff]
    %vm64 = vcmask 130048
    %v66 = vsel %vm64, %v62, 0
    %v69 = vsel %vm64, %v63, 0
    %71 = vmatpush.msra.mxu0 0.0
    %72 = vmatpush.msra.mxu0 0.0
    %73 = vmatpush.msra.mxu0 0.0
    %74 = vmatpush.msra.mxu0 0.0
    %75 = vmatpush.msra.mxu0 0.0
    %76 = vmatpush.msra.mxu0 0.0
    %77 = vmatpush.msra.mxu0 0.0
    %78 = vmatpush.msra.mxu0 0.0
    %79 = vmatpush.msra.mxu0 0.0
    %80 = vmatpush.msra.mxu0 0.0
    %81 = vmatpush.msra.mxu0 0.0
    %82 = vmatpush.msra.mxu0 0.0
    %83 = vmatpush.msra.mxu0 0.0
    %84 = vmatpush.msra.mxu0 0.0
    %85 = vmatpush.msra.mxu0 %v61
    %86 = vmatpush.msra.mxu0 %v60
    %87 = vmatmul.f32.gmra.mxu0 %v66
    %v88 = vpop.f32.mrf.mxu0
    %v89 = vadd.f32 0.0, %v88
    %90 = vmatmul.f32.gmra.mxu0 %v69
    %v91 = vpop.f32.mrf.mxu0
    %v92 = vadd.f32 0.0, %v91
    %93 = vdwg.mxu0
    %v94 = vmax.f32 %v89, 0.0
    %v95 = vmax.f32 %v92, 0.0
    %v96 = vld [vmem:[#allocation2] sm:$0xff]
    %v98 = vsel %vm64, %v96, 0
    %100 = vmatpush.msra.mxu0 0.0
    %101 = vmatpush.msra.mxu0 0.0
    %102 = vmatpush.msra.mxu0 0.0
    %103 = vmatpush.msra.mxu0 0.0
    %104 = vmatpush.msra.mxu0 0.0
    %105 = vmatpush.msra.mxu0 0.0
    %106 = vmatpush.msra.mxu0 0.0
    %107 = vmatpush.msra.mxu0 0.0
    %108 = vmatpush.msra.mxu0 0.0
    %109 = vmatpush.msra.mxu0 0.0
    %110 = vmatpush.msra.mxu0 0.0
    %111 = vmatpush.msra.mxu0 0.0
    %112 = vmatpush.msra.mxu0 0.0
    %113 = vmatpush.msra.mxu0 0.0
    %114 = vmatpush.msra.mxu0 %v95
    %115 = vmatpush.msra.mxu0 %v94
    %116 = vmatmul.f32.gmra.mxu0 %v98
    %v117 = vpop.f32.mrf.mxu0
    %v118 = vadd.f32 0.0, %v117
    %119 = vdwg.mxu0
    %120 = vst [vmem:[#allocation5] sm:$0x1] %v118
    // Predicated region
    $region22: #{tpu_custom_call.1} parent=1 // pred_check
      _
    $region23: #{tpu_custom_call.1} parent=1 // pred_check_branch
      %122 = sbr.rel (0) target = $region25
    $region24: #{tpu_custom_call.1} parent=1 // pred_region
      %124 = vsyncadd [#allocation4], 0
      %s126 = sshll.u32 [#allocation5], 4
      %s127 = int_to_ptr.vmem [resolvable:$true] %s126
      %s128 = sshll.u32 %s4, 4
      %s129 = int_to_ptr.hbm [resolvable:$true] %s128
      %131 = dma.vmem_to_hbm [thread:$0]  %s127, 16, %s129, [#allocation4]
    $region25: #{tpu_custom_call.1} parent=1 // pred_fallthru
      _
    // Predicated region
    $region26: #{tpu_custom_call.1} parent=1 // pred_check
      _
    $region27: #{tpu_custom_call.1} parent=1 // pred_check_branch
      %133 = sbr.rel (0) target = $region29
    $region28: #{tpu_custom_call.1} parent=1 // pred_region
      %135 = dma.done [#allocation4], 16
    $region29: #{tpu_custom_call.1} parent=1 // pred_fallthru
      _
    %136 = vsyncpa [#allocation3], 1
    %137 = vsyncpa [#allocation4], 1

</llo_original>
